<compile_context>
chip_gen: v7x
topology: tpu7x:2x2x1
jax: 0.10.0
libtpu: 0.0.40
codegen_flags: <defaults>
</compile_context>

<pallas_src>
import functools

import jax
import jax.numpy as jnp
from jax.experimental import pallas as pl
from jax.experimental.pallas import tpu as pltpu


def _round_up(x: int, m: int) -> int:
    return ((x + m - 1) // m) * m


def _device_kind() -> str:
    try:
        return jax.devices()[0].device_kind.lower()
    except Exception:
        return ""


def _default_elementwise_dtype():
    # bf16 VALUs are native on v6e / v7x; v5e and older keep f32 elementwise.
    kind = _device_kind()
    if "v6" in kind or "v7" in kind or "7x" in kind:
        return jnp.bfloat16
    return jnp.float32


def _cores_per_chip() -> int:
    # v7x has 2 TensorCores per chip; earlier generations have 1.
    kind = _device_kind()
    return 2 if ("v7" in kind or "7x" in kind) else 1


def value_net_kernel(x_ref, w1_ref, b1_ref, w2_ref, b2_ref, w3_ref, b3_ref,
                     o_ref, *, ew_dtype):
    # l1 + relu: bf16 MXU operands, f32 accumulation; bias/ReLU on the VPU in
    # ew_dtype (bf16 on v6e/v7x, f32 on v5e).
    x = x_ref[...].astype(jnp.bfloat16)                              # (TB, S)
    h1 = jnp.dot(x, w1_ref[...], preferred_element_type=jnp.float32)
    h1 = jnp.maximum(h1.astype(ew_dtype) + b1_ref[...].astype(ew_dtype), 0)

    # l2 + relu
    h2 = jnp.dot(h1.astype(jnp.bfloat16), w2_ref[...],
                 preferred_element_type=jnp.float32)
    h2 = jnp.maximum(h2.astype(ew_dtype) + b2_ref[...].astype(ew_dtype), 0)

    # l3 (256 -> 1): VPU multiply + cross-lane reduction (keeps the MXU free).
    # w3 is kept f32 so the 256-term accumulation happens in f32.
    q = jnp.sum(h2 * w3_ref[...], axis=-1, keepdims=True)           # (TB, 1) f32
    q = q + b3_ref[0, 0]                                            # scalar from SMEM

    # Lane-dense store: relayout the (TB, 1) column into a (1, TB) row so the
    # output block is written with unmasked full-lane stores and one
    # contiguous DMA per tile.
    o_ref[...] = jnp.transpose(q).astype(o_ref.dtype)


def prepare_params(params):
    """One-time conversion of PyTorch-convention params into kernel layout.

    PyTorch shapes: w1 (256, state_dim), w2 (256, 256), w3 (1, 256), b* (out,).
    Kernel layout:  w1/w2 transposed to (in, out) and cast to bf16 (MXU);
                    biases as f32 rows; w3 kept as an f32 (1, 256) row for the
                    VPU reduction; b3 as a (1, 1) f32 scalar for SMEM.
    """
    return {
        "w1": jnp.asarray(params["w1"].T, jnp.bfloat16),               # (S, 256)
        "b1": jnp.asarray(params["b1"].reshape(1, -1), jnp.float32),   # (1, 256)
        "w2": jnp.asarray(params["w2"].T, jnp.bfloat16),               # (256, 256)
        "b2": jnp.asarray(params["b2"].reshape(1, -1), jnp.float32),   # (1, 256)
        "w3": jnp.asarray(params["w3"].reshape(1, -1), jnp.float32),   # (1, 256)
        "b3": jnp.asarray(params["b3"].reshape(1, 1), jnp.float32),    # (1, 1)
    }


def value_net_forward(state, prepared, *, tb: int = 1024, ew_dtype=None):
    """state: (B, state_dim) f32. prepared: output of prepare_params()."""
    B, state_dim = state.shape
    hidden = prepared["w1"].shape[1]  # 256
    if ew_dtype is None:
        ew_dtype = _default_elementwise_dtype()

    # Batch tile: big (default 1024, multiple of 256) to amortize the per-step
    # overhead; small batches shrink to a multiple of 8 (sublane alignment).
    tb = max(8, _round_up(tb, 8))
    TB = min(tb, _round_up(B, 8))
    # v7x: ensure at least one grid step per TensorCore for mid/large batches
    # so dimension_semantics=("parallel",) actually uses both cores.
    cores = _cores_per_chip()
    while cores > 1 and pl.cdiv(B, TB) < cores and TB > 256:
        TB = _round_up(TB // 2, 256)

    num_tiles = pl.cdiv(B, TB)   # ragged last tile handled by Pallas; no jnp.pad

    out = pl.pallas_call(
        functools.partial(value_net_kernel, ew_dtype=ew_dtype),
        out_shape=jax.ShapeDtypeStruct((num_tiles, TB), jnp.float32),
        grid=(num_tiles,),
        in_specs=[
            # state: tiled over the batch grid axis (ragged last tile OK).
            pl.BlockSpec((TB, state_dim), lambda i: (i, 0)),
            # weights / biases: same block every step -> VMEM-resident.
            pl.BlockSpec((state_dim, hidden), lambda i: (0, 0)),   # w1 (bf16)
            pl.BlockSpec((1, hidden), lambda i: (0, 0)),           # b1 (f32)
            pl.BlockSpec((hidden, hidden), lambda i: (0, 0)),      # w2 (bf16)
            pl.BlockSpec((1, hidden), lambda i: (0, 0)),           # b2 (f32)
            pl.BlockSpec((1, hidden), lambda i: (0, 0)),           # w3 row (f32)
            # b3: loop-invariant scalar -> SMEM, not a lane-padded VMEM tile.
            pl.BlockSpec(memory_space=pltpu.MemorySpace.SMEM),
        ],
        # Lane-dense output slab: one (1, TB) row per grid step.
        out_specs=pl.BlockSpec((1, TB), lambda i: (i, 0)),
        compiler_params=pltpu.CompilerParams(
            dimension_semantics=("parallel",),
            vmem_limit_bytes=32 * 1024 * 1024,
        ),
    )(state, prepared["w1"], prepared["b1"], prepared["w2"], prepared["b2"],
      prepared["w3"], prepared["b3"])

    # (num_tiles, TB) lane-major slab -> (B, 1). The slice only copies B*4
    # bytes (drops ragged-tile garbage lanes) — negligible vs. the state read.
    return out.reshape(-1)[:B].reshape(B, 1)


def init_params(key, state_dim):
    """Deterministic synthetic init matching nn.Linear (uniform +-1/sqrt(fan_in))."""
    ks = jax.random.split(key, 6)

    def linear(kw, kb, fan_in, fan_out):
        bound = 1.0 / jnp.sqrt(fan_in)
        w = jax.random.uniform(kw, (fan_out, fan_in), jnp.float32, -bound, bound)
        b = jax.random.uniform(kb, (fan_out,), jnp.float32, -bound, bound)
        return w, b

    w1, b1 = linear(ks[0], ks[1], state_dim, 256)
    w2, b2 = linear(ks[2], ks[3], 256, 256)
    w3, b3 = linear(ks[4], ks[5], 256, 1)
    return {"w1": w1, "b1": b1, "w2": w2, "b2": b2, "w3": w3, "b3": b3}


def ref_forward(state, params):
    h1 = jnp.maximum(state @ params["w1"].T + params["b1"], 0.0)
    h2 = jnp.maximum(h1 @ params["w2"].T + params["b2"], 0.0)
    return h2 @ params["w3"].T + params["b3"]


if __name__ == "__main__":
    key = jax.random.PRNGKey(0)
    k_params, k_state = jax.random.split(key)

    state_dim = 24   # BipedalWalker observation dim
    batch = 8

    params = init_params(k_params, state_dim)
    prepared = prepare_params(params)   # transpose / cast ONCE at load time

    # Small-batch path (single tile, grid=(1,)).
    state = jax.random.normal(k_state, (batch, state_dim), jnp.float32)
    out = jax.block_until_ready(value_net_forward(state, prepared))
    ref = ref_forward(state, params)
    assert out.shape == (batch, 1)
    assert jnp.allclose(out, ref, atol=5e-2, rtol=5e-2), (out, ref)

    # Multi-tile path with a ragged last tile (no wrapper-side padding).
    state2 = jax.random.normal(jax.random.PRNGKey(1), (300, state_dim), jnp.float32)
    out2 = jax.block_until_ready(value_net_forward(state2, prepared, tb=128))
    ref2 = ref_forward(state2, params)
    assert out2.shape == (300, 1)
    assert jnp.allclose(out2, ref2, atol=5e-2, rtol=5e-2), (
        float(jnp.max(jnp.abs(out2 - ref2))))

    print("KERNEL_OK")
</pallas_src>

<mosaic_0001>
module attributes {stable_mosaic.version = 11 : i64} {
  func.func @value_net_kernel(%arg0: i32, %arg1: memref<8x24xf32, #tpu.memory_space<vmem>>, %arg2: memref<24x256xbf16, #tpu.memory_space<vmem>>, %arg3: memref<1x256xf32, #tpu.memory_space<vmem>>, %arg4: memref<256x256xbf16, #tpu.memory_space<vmem>>, %arg5: memref<1x256xf32, #tpu.memory_space<vmem>>, %arg6: memref<1x256xf32, #tpu.memory_space<vmem>>, %arg7: memref<1x1xf32, #tpu.memory_space<smem>>, %arg8: memref<1x8xf32, #tpu.memory_space<vmem>>) attributes {dimension_semantics = [#tpu.dimension_semantics<parallel>], iteration_bounds = array<i64: 1>, scalar_prefetch = 0 : i64, scratch_operands = 0 : i64, tpu.core_type = #tpu.core_type<tc>, window_params = [{transform_indices = @transform_0, window_bounds = array<i64: 8, 24>}, {pipeline_mode = #tpu.pipeline_mode<synchronous>, transform_indices = @transform_1, window_bounds = array<i64: 24, 256>}, {pipeline_mode = #tpu.pipeline_mode<synchronous>, transform_indices = @transform_2, window_bounds = array<i64: 1, 256>}, {pipeline_mode = #tpu.pipeline_mode<synchronous>, transform_indices = @transform_3, window_bounds = array<i64: 256, 256>}, {pipeline_mode = #tpu.pipeline_mode<synchronous>, transform_indices = @transform_4, window_bounds = array<i64: 1, 256>}, {pipeline_mode = #tpu.pipeline_mode<synchronous>, transform_indices = @transform_5, window_bounds = array<i64: 1, 256>}, {transform_indices = @transform_6, window_bounds = array<i64: 1, 1>}, {transform_indices = @transform_7, window_bounds = array<i64: 1, 8>}]} {
    %c0 = arith.constant 0 : index
    %c0_0 = arith.constant 0 : index
    %0 = vector.load %arg1[%c0, %c0_0] : memref<8x24xf32, #tpu.memory_space<vmem>>, vector<8x24xf32>
    %1 = arith.truncf %0 : vector<8x24xf32> to vector<8x24xbf16>
    %c0_1 = arith.constant 0 : index
    %c0_2 = arith.constant 0 : index
    %2 = vector.load %arg2[%c0_1, %c0_2] : memref<24x256xbf16, #tpu.memory_space<vmem>>, vector<24x256xbf16>
    %cst = arith.constant dense<0.000000e+00> : vector<8x256xf32>
    %3 = tpu.matmul %1, %2, %cst {dimension_numbers = #tpu.dot_dimension_numbers<[1], [0], [0], [1], [0, 0, 1, 1], [], []>} : vector<8x24xbf16>, vector<24x256xbf16>, vector<8x256xf32> -> vector<8x256xf32>
    %c0_3 = arith.constant 0 : index
    %c0_4 = arith.constant 0 : index
    %4 = vector.load %arg3[%c0_3, %c0_4] : memref<1x256xf32, #tpu.memory_space<vmem>>, vector<1x256xf32>
    %5 = vector.broadcast %4 : vector<1x256xf32> to vector<8x256xf32>
    %6 = arith.addf %3, %5 : vector<8x256xf32>
    %cst_5 = arith.constant 0.000000e+00 : f32
    %7 = vector.broadcast %cst_5 : f32 to vector<8x256xf32>
    %8 = arith.maximumf %6, %7 : vector<8x256xf32>
    %9 = arith.truncf %8 : vector<8x256xf32> to vector<8x256xbf16>
    %c0_6 = arith.constant 0 : index
    %c0_7 = arith.constant 0 : index
    %10 = vector.load %arg4[%c0_6, %c0_7] : memref<256x256xbf16, #tpu.memory_space<vmem>>, vector<256x256xbf16>
    %cst_8 = arith.constant dense<0.000000e+00> : vector<8x256xf32>
    %11 = tpu.matmul %9, %10, %cst_8 {dimension_numbers = #tpu.dot_dimension_numbers<[1], [0], [0], [1], [0, 0, 1, 1], [], []>} : vector<8x256xbf16>, vector<256x256xbf16>, vector<8x256xf32> -> vector<8x256xf32>
    %c0_9 = arith.constant 0 : index
    %c0_10 = arith.constant 0 : index
    %12 = vector.load %arg5[%c0_9, %c0_10] : memref<1x256xf32, #tpu.memory_space<vmem>>, vector<1x256xf32>
    %13 = vector.broadcast %12 : vector<1x256xf32> to vector<8x256xf32>
    %14 = arith.addf %11, %13 : vector<8x256xf32>
    %cst_11 = arith.constant 0.000000e+00 : f32
    %15 = vector.broadcast %cst_11 : f32 to vector<8x256xf32>
    %16 = arith.maximumf %14, %15 : vector<8x256xf32>
    %c0_12 = arith.constant 0 : index
    %c0_13 = arith.constant 0 : index
    %17 = vector.load %arg6[%c0_12, %c0_13] : memref<1x256xf32, #tpu.memory_space<vmem>>, vector<1x256xf32>
    %18 = vector.broadcast %17 : vector<1x256xf32> to vector<8x256xf32>
    %19 = arith.mulf %16, %18 : vector<8x256xf32>
    %cst_14 = arith.constant dense<0.000000e+00> : vector<8xf32>
    %20 = vector.multi_reduction <add>, %19, %cst_14 [1] : vector<8x256xf32> to vector<8xf32>
    %21 = vector.shape_cast %20 : vector<8xf32> to vector<8x1xf32>
    %c0_15 = arith.constant 0 : index
    %c0_16 = arith.constant 0 : index
    %22 = memref.load %arg7[%c0_15, %c0_16] : memref<1x1xf32, #tpu.memory_space<smem>>
    %23 = vector.broadcast %22 : f32 to vector<8x1xf32>
    %24 = arith.addf %21, %23 : vector<8x1xf32>
    %25 = tpu.transpose %24, [1, 0] : vector<8x1xf32> -> vector<1x8xf32>
    %c0_17 = arith.constant 0 : index
    %c0_18 = arith.constant 0 : index
    %26 = vector.load %arg8[%c0_17, %c0_18] : memref<1x8xf32, #tpu.memory_space<vmem>>, vector<1x8xf32>
    tpu.vector_store %arg8[%c0_17, %c0_18], %25 {strides = array<i32>} : memref<1x8xf32, #tpu.memory_space<vmem>>, vector<1x8xf32>,
    return
  }
  func.func @transform_0(%arg0: i32) -> (i32, i32) {
    %c0_i32 = arith.constant 0 : i32
    %c0_i32_0 = arith.constant 0 : i32
    return %arg0, %c0_i32 : i32, i32
  }
  func.func @transform_1(%arg0: i32) -> (i32, i32) {
    %c0_i32 = arith.constant 0 : i32
    %c0_i32_0 = arith.constant 0 : i32
    %c0_i32_1 = arith.constant 0 : i32
    return %c0_i32, %c0_i32_0 : i32, i32
  }
  func.func @transform_2(%arg0: i32) -> (i32, i32) {
    %c0_i32 = arith.constant 0 : i32
    %c0_i32_0 = arith.constant 0 : i32
    %c0_i32_1 = arith.constant 0 : i32
    return %c0_i32, %c0_i32_0 : i32, i32
  }
  func.func @transform_3(%arg0: i32) -> (i32, i32) {
    %c0_i32 = arith.constant 0 : i32
    %c0_i32_0 = arith.constant 0 : i32
    %c0_i32_1 = arith.constant 0 : i32
    return %c0_i32, %c0_i32_0 : i32, i32
  }
  func.func @transform_4(%arg0: i32) -> (i32, i32) {
    %c0_i32 = arith.constant 0 : i32
    %c0_i32_0 = arith.constant 0 : i32
    %c0_i32_1 = arith.constant 0 : i32
    return %c0_i32, %c0_i32_0 : i32, i32
  }
  func.func @transform_5(%arg0: i32) -> (i32, i32) {
    %c0_i32 = arith.constant 0 : i32
    %c0_i32_0 = arith.constant 0 : i32
    %c0_i32_1 = arith.constant 0 : i32
    return %c0_i32, %c0_i32_0 : i32, i32
  }
  func.func @transform_6(%arg0: i32) -> (i32, i32) {
    %c0_i32 = arith.constant 0 : i32
    %c0_i32_0 = arith.constant 0 : i32
    %c0_i32_1 = arith.constant 0 : i32
    return %c0_i32, %c0_i32_0 : i32, i32
  }
  func.func @transform_7(%arg0: i32) -> (i32, i32) {
    %c0_i32 = arith.constant 0 : i32
    %c0_i32_0 = arith.constant 0 : i32
    return %arg0, %c0_i32 : i32, i32
  }
}

</mosaic_0001>

<llo_original>
// kernel: tpu_custom_call.1
$region0: #{tpu_custom_call.1}
  #allocation0 [shape = 'u32[]', space=smem, size = 0x4, offset = 0x4, fixed_abs, tag = 'smem constant byte address 0x4 - core index']
  #allocation1 [shape = 'u32[144,128]{1,0:T(1,128)}', space=vmem, size = 0x12000, scoped, tag = 'internal scratch']
  #allocation2 [shape = 'f32[1,1]{1,0:T(1,128)S(6)}', space=smem, size = 0x200, scoped, tag = 'scoped memory for tpu_custom_call.1']
  %s0 = inlined_call_operand.hbm [shape: f32[8,24], index: 0, kind: input, shape index: {}]
  %s1 = inlined_call_operand.hbm [shape: bf16[24,256], index: 1, kind: input, shape index: {}]
  %s2 = inlined_call_operand.vmem [shape: f32[1,256], index: 2, kind: input, shape index: {}]
  %s3 = inlined_call_operand.hbm [shape: bf16[256,256], index: 3, kind: input, shape index: {}]
  %s4 = inlined_call_operand.vmem [shape: f32[1,256], index: 4, kind: input, shape index: {}]
  %s5 = inlined_call_operand.vmem [shape: f32[1,256], index: 5, kind: input, shape index: {}]
  %s6 = inlined_call_operand.<no memory space> [shape: f32[1,1], index: 6, kind: input, shape index: {}]
  %s7 = inlined_call_operand.hbm [shape: f32[1,8], index: 7, kind: output, shape index: {}]
  %s8 = sld [smem:[#allocation0]]
  $region50: #{tpu_custom_call.1} parent=0
    _
  %s10 = ssub.s32 1, %s8
  %s11 = scalar_select 0, %s10, %s8
  %12 = sst [smem:[#allocation2]] %s6
  $region1: #{tpu_custom_call.1} parent=0
    #allocation3 [shape = 'u8[4096]{0}', space=vmem, size = 0x1000, scoped, tag = 'input window, operand 0, single buffered']
    #allocation4 [shape = 's32[1]{0}', space=sflag, size = 0x4, scoped, tag = 'scoped memory for tpu_custom_call.1']
    #allocation5 [shape = 's32[1]{0}', space=sflag, size = 0x4, scoped, tag = 'scoped memory for tpu_custom_call.1']
    #allocation6 [shape = 'u8[12288]{0}', space=vmem, size = 0x3000, scoped, tag = 'input window, operand 1, single buffered']
    #allocation7 [shape = 's32[1]{0}', space=sflag, size = 0x4, scoped, tag = 'scoped memory for tpu_custom_call.1']
    #allocation8 [shape = 'u8[131072]{0}', space=vmem, size = 0x20000, scoped, tag = 'input window, operand 3, single buffered']
    #allocation9 [shape = 'u8[512]{0}', space=vmem, size = 0x400, scoped, tag = 'output window, operand 0, single buffered']
    %13 = vsyncpa [#allocation4], 0
    %14 = vsyncpa [#allocation7], 0
    %15 = vsyncpa [#allocation5], 0
    // Predicated region
    $region2: #{tpu_custom_call.1} parent=1 // pred_check
      _
    $region3: #{tpu_custom_call.1} parent=1 // pred_check_branch
      %17 = sbr.rel (0) target = $region5
    $region4: #{tpu_custom_call.1} parent=1 // pred_region
      %s19 = ssub.s32 128, 128
      %20 = vsyncadd [#allocation4], %s19
      %s22 = sshll.u32 [#allocation3], 4
      %s23 = int_to_ptr.vmem [resolvable:$true] %s22
      %25 = dma.hbm_to_vmem [thread:$0]  %s0, 128, %s23, [#allocation4]
    $region5: #{tpu_custom_call.1} parent=1 // pred_fallthru
      _
    // Predicated region
    $region6: #{tpu_custom_call.1} parent=1 // pred_check
      _
    $region7: #{tpu_custom_call.1} parent=1 // pred_check_branch
      %27 = sbr.rel (0) target = $region9
    $region8: #{tpu_custom_call.1} parent=1 // pred_region
      %s29 = ssub.s32 384, 384
      %30 = vsyncadd [#allocation7], %s29
      %s31 = sshll.u32 [#allocation6], 4
      %s32 = int_to_ptr.vmem [resolvable:$true] %s31
      %37 = dma.hbm_to_vmem [thread:$0]  %s1, 384, %s32, [#allocation7], 128, 128, 8
    $region9: #{tpu_custom_call.1} parent=1 // pred_fallthru
      _
    // Predicated region
    $region10: #{tpu_custom_call.1} parent=1 // pred_check
      _
    $region11: #{tpu_custom_call.1} parent=1 // pred_check_branch
      %39 = sbr.rel (0) target = $region13
    $region12: #{tpu_custom_call.1} parent=1 // pred_region
      _
    $region13: #{tpu_custom_call.1} parent=1 // pred_fallthru
      _
    // Predicated region
    $region14: #{tpu_custom_call.1} parent=1 // pred_check
      _
    $region15: #{tpu_custom_call.1} parent=1 // pred_check_branch
      %41 = sbr.rel (0) target = $region17
    $region16: #{tpu_custom_call.1} parent=1 // pred_region
      %s43 = ssub.s32 4096, 4096
      %44 = vsyncadd [#allocation7], %s43
      %s45 = sshll.u32 [#allocation8], 4
      %s46 = int_to_ptr.vmem [resolvable:$true] %s45
      %51 = dma.hbm_to_vmem [thread:$0]  %s3, 4096, %s46, [#allocation7], 128, 128, 8
    $region17: #{tpu_custom_call.1} parent=1 // pred_fallthru
      _
    // Predicated region
    $region18: #{tpu_custom_call.1} parent=1 // pred_check
      _
    $region19: #{tpu_custom_call.1} parent=1 // pred_check_branch
      %53 = sbr.rel (0) target = $region21
    $region20: #{tpu_custom_call.1} parent=1 // pred_region
      _
    $region21: #{tpu_custom_call.1} parent=1 // pred_fallthru
      _
    // Predicated region
    $region22: #{tpu_custom_call.1} parent=1 // pred_check
      _
    $region23: #{tpu_custom_call.1} parent=1 // pred_check_branch
      %55 = sbr.rel (0) target = $region25
    $region24: #{tpu_custom_call.1} parent=1 // pred_region
      _
    $region25: #{tpu_custom_call.1} parent=1 // pred_fallthru
      _
    // Predicated region
    $region26: #{tpu_custom_call.1} parent=1 // pred_check
      _
    $region27: #{tpu_custom_call.1} parent=1 // pred_check_branch
      %57 = sbr.rel (0) target = $region29
    $region28: #{tpu_custom_call.1} parent=1 // pred_region
      _
    $region29: #{tpu_custom_call.1} parent=1 // pred_fallthru
      _
    // Predicated region
    $region30: #{tpu_custom_call.1} parent=1 // pred_check
      _
    $region31: #{tpu_custom_call.1} parent=1 // pred_check_branch
      %59 = sbr.rel (0) target = $region33
    $region32: #{tpu_custom_call.1} parent=1 // pred_region
      %60 = dma.done [#allocation4], 128
    $region33: #{tpu_custom_call.1} parent=1 // pred_fallthru
      _
    // Predicated region
    $region34: #{tpu_custom_call.1} parent=1 // pred_check
      _
    $region35: #{tpu_custom_call.1} parent=1 // pred_check_branch
      %62 = sbr.rel (0) target = $region37
    $region36: #{tpu_custom_call.1} parent=1 // pred_region
      %63 = dma.done [#allocation7], 384
    $region37: #{tpu_custom_call.1} parent=1 // pred_fallthru
      _
    // Predicated region
    $region38: #{tpu_custom_call.1} parent=1 // pred_check
      _
    $region39: #{tpu_custom_call.1} parent=1 // pred_check_branch
      %65 = sbr.rel (0) target = $region41
    $region40: #{tpu_custom_call.1} parent=1 // pred_region
      %66 = dma.done [#allocation7], 4096
    $region41: #{tpu_custom_call.1} parent=1 // pred_fallthru
      _
    %v68 = vld [vmem:[#allocation3] sm:$0xff]
    %v69 = vpack.c.bf16 %v68, %v68
    %v70 = vld [vmem:[#allocation6] sm:$0xff]
    %v71 = vld [vmem:[#allocation6 + $0x8] sm:$0xff]
    %v72 = vld [vmem:[#allocation6 + $0x10] sm:$0xff]
    %v73 = vld [vmem:[%s2] sm:$0x3]
    %v75 = vlaneseq
    %v76 = vshrl.u32 %v75, 7
    %v77 = vsub.s32 0, %v76
    %v78 = vrot.slane %v73, %v77
    %v79 = vlaneseq
    %v80 = vshrl.u32 %v79, 7
    %v81 = vsub.s32 1, %v80
    %v82 = vrot.slane %v73, %v81
    %v88 = vunpack.c.l.b16 %v70
    %v89 = vunpack.c.h.b16 %v70
    %v90 = vunpack.c.l.b16 %v71
    %v91 = vunpack.c.h.b16 %v71
    %v92 = vunpack.c.l.b16 %v72
    %v93 = vunpack.c.h.b16 %v72
    %v94 = vpack.c.b16 %v90, %v88
    %v95 = vpack.c.b16 %v91, %v89
    %v96 = vpack.c.b16 %v92, %v92
    %v97 = vpack.c.b16 %v93, %v93
    %vm100 = vcmask 195584
    %v102 = vsel %vm100, %v69, 0
    %vm104 = vcmask 1043456
    %v106 = vsel %vm104, %v96, 0
    %v109 = vsel %vm104, %v97, 0
    %111 = vmatprep.subr.bf16.mxu0 %v95
    %112 = vmatpush1.bf16.msra.mxu0 %v94
    %113 = vmatprep.subr.bf16.mxu0 %v109
    %114 = vmatpush1.bf16.msra.mxu0 %v106
    %115 = vmatprep.subr.bf16.mxu0 0
    %116 = vmatpush1.bf16.msra.mxu0 0
    %117 = vmatprep.subr.bf16.mxu0 0
    %118 = vmatpush1.bf16.msra.mxu0 0
    %119 = vmatprep.subr.bf16.mxu0 0
    %120 = vmatpush1.bf16.msra.mxu0 0
    %121 = vmatprep.subr.bf16.mxu0 0
    %122 = vmatpush1.bf16.msra.mxu0 0
    %123 = vmatprep.subr.bf16.mxu0 0
    %124 = vmatpush1.bf16.msra.mxu0 0
    %125 = vmatprep.subr.bf16.mxu0 0
    %126 = vmatpush1.bf16.msra.mxu0 0
    %127 = vmatprep.subr.bf16.mxu0 0
    %128 = vmatpush1.bf16.msra.mxu0 0
    %129 = vmatprep.subr.bf16.mxu0 0
    %130 = vmatpush1.bf16.msra.mxu0 0
    %131 = vmatprep.subr.bf16.mxu0 0
    %132 = vmatpush1.bf16.msra.mxu0 0
    %133 = vmatprep.subr.bf16.mxu0 0
    %134 = vmatpush1.bf16.msra.mxu0 0
    %135 = vmatprep.subr.bf16.mxu0 0
    %136 = vmatpush1.bf16.msra.mxu0 0
    %137 = vmatprep.subr.bf16.mxu0 0
    %138 = vmatpush1.bf16.msra.mxu0 0
    %139 = vmatprep.subr.bf16.mxu0 0
    %140 = vmatpush1.bf16.msra.mxu0 0
    %141 = vmatprep.subr.bf16.mxu0 0
    %142 = vmatpush1.bf16.msra.mxu0 0
    %143 = vmatprep.mubr.bf16.mxu0 0
    %144 = vmatmul.mubr.bf16.gmra.mrb[0].mxu0 %v102
    %v145 = vpop.f32.mrb[0].mxu0
    %v146 = vadd.f32 %v78, %v145
    %v147 = vpop.f32.mrb[0].mxu0
    %v148 = vadd.f32 %v82, %v147
    %v149 = vpop.f32.mrb[0].mxu0
    %v150 = vpop.f32.mrb[0].mxu0
    %151 = vdwg.mxu0
    %v152 = vmax.f32 %v146, 0.0
    %v153 = vmax.f32 %v148, 0.0
    %v154 = vpack.c.bf16 %v152, %v152
    %v155 = vpack.c.bf16 %v153, %v153
    %v156 = vld [vmem:[#allocation8] sm:$0xff]
    %v157 = vld [vmem:[#allocation8 + $0x8] sm:$0xff]
    %v158 = vld [vmem:[#allocation8 + $0x10] sm:$0xff]
    %v159 = vld [vmem:[#allocation8 + $0x18] sm:$0xff]
    %v160 = vld [vmem:[#allocation8 + $0x20] sm:$0xff]
    %v161 = vld [vmem:[#allocation8 + $0x28] sm:$0xff]
    %v162 = vld [vmem:[#allocation8 + $0x30] sm:$0xff]
    %v163 = vld [vmem:[#allocation8 + $0x38] sm:$0xff]
    %v164 = vld [vmem:[#allocation8 + $0x40] sm:$0xff]
    %v165 = vld [vmem:[#allocation8 + $0x48] sm:$0xff]
    %v166 = vld [vmem:[#allocation8 + $0x50] sm:$0xff]
    %v167 = vld [vmem:[#allocation8 + $0x58] sm:$0xff]
    %v168 = vld [vmem:[#allocation8 + $0x60] sm:$0xff]
    %v169 = vld [vmem:[#allocation8 + $0x68] sm:$0xff]
    %v170 = vld [vmem:[#allocation8 + $0x70] sm:$0xff]
    %v171 = vld [vmem:[#allocation8 + $0x78] sm:$0xff]
    %v172 = vld [vmem:[#allocation8 + $0x80] sm:$0xff]
    %v173 = vld [vmem:[#allocation8 + $0x88] sm:$0xff]
    %v174 = vld [vmem:[#allocation8 + $0x90] sm:$0xff]
    %v175 = vld [vmem:[#allocation8 + $0x98] sm:$0xff]
    %v176 = vld [vmem:[#allocation8 + $0xa0] sm:$0xff]
    %v177 = vld [vmem:[#allocation8 + $0xa8] sm:$0xff]
    %v178 = vld [vmem:[#allocation8 + $0xb0] sm:$0xff]
    %v179 = vld [vmem:[#allocation8 + $0xb8] sm:$0xff]
    %v180 = vld [vmem:[#allocation8 + $0xc0] sm:$0xff]
    %v181 = vld [vmem:[#allocation8 + $0xc8] sm:$0xff]
    %v182 = vld [vmem:[#allocation8 + $0xd0] sm:$0xff]
    %v183 = vld [vmem:[#allocation8 + $0xd8] sm:$0xff]
    %v184 = vld [vmem:[#allocation8 + $0xe0] sm:$0xff]
    %v185 = vld [vmem:[#allocation8 + $0xe8] sm:$0xff]
    %v186 = vld [vmem:[#allocation8 + $0xf0] sm:$0xff]
    %v187 = vld [vmem:[#allocation8 + $0xf8] sm:$0xff]
    %v188 = vld [vmem:[%s4] sm:$0x3]
    %v190 = vlaneseq
    %v191 = vshrl.u32 %v190, 7
    %v192 = vsub.s32 0, %v191
    %v193 = vrot.slane %v188, %v192
    %v194 = vlaneseq
    %v195 = vshrl.u32 %v194, 7
    %v196 = vsub.s32 1, %v195
    %v197 = vrot.slane %v188, %v196
    %v232 = vunpack.c.l.b16 %v156
    %v233 = vunpack.c.h.b16 %v156
    %v234 = vunpack.c.l.b16 %v157
    %v235 = vunpack.c.h.b16 %v157
    %v236 = vunpack.c.l.b16 %v158
    %v237 = vunpack.c.h.b16 %v158
    %v238 = vunpack.c.l.b16 %v159
    %v239 = vunpack.c.h.b16 %v159
    %v240 = vunpack.c.l.b16 %v160
    %v241 = vunpack.c.h.b16 %v160
    %v242 = vunpack.c.l.b16 %v161
    %v243 = vunpack.c.h.b16 %v161
    %v244 = vunpack.c.l.b16 %v162
    %v245 = vunpack.c.h.b16 %v162
    %v246 = vunpack.c.l.b16 %v163
    %v247 = vunpack.c.h.b16 %v163
    %v248 = vunpack.c.l.b16 %v164
    %v249 = vunpack.c.h.b16 %v164
    %v250 = vunpack.c.l.b16 %v165
    %v251 = vunpack.c.h.b16 %v165
    %v252 = vunpack.c.l.b16 %v166
    %v253 = vunpack.c.h.b16 %v166
    %v254 = vunpack.c.l.b16 %v167
    %v255 = vunpack.c.h.b16 %v167
    %v256 = vunpack.c.l.b16 %v168
    %v257 = vunpack.c.h.b16 %v168
    %v258 = vunpack.c.l.b16 %v169
    %v259 = vunpack.c.h.b16 %v169
    %v260 = vunpack.c.l.b16 %v170
    %v261 = vunpack.c.h.b16 %v170
    %v262 = vunpack.c.l.b16 %v171
    %v263 = vunpack.c.h.b16 %v171
    %v264 = vunpack.c.l.b16 %v172
    %v265 = vunpack.c.h.b16 %v172
    %v266 = vunpack.c.l.b16 %v173
    %v267 = vunpack.c.h.b16 %v173
    %v268 = vunpack.c.l.b16 %v174
    %v269 = vunpack.c.h.b16 %v174
    %v270 = vunpack.c.l.b16 %v175
    %v271 = vunpack.c.h.b16 %v175
    %v272 = vunpack.c.l.b16 %v176
    %v273 = vunpack.c.h.b16 %v176
    %v274 = vunpack.c.l.b16 %v177
    %v275 = vunpack.c.h.b16 %v177
    %v276 = vunpack.c.l.b16 %v178
    %v277 = vunpack.c.h.b16 %v178
    %v278 = vunpack.c.l.b16 %v179
    %v279 = vunpack.c.h.b16 %v179
    %v280 = vunpack.c.l.b16 %v180
    %v281 = vunpack.c.h.b16 %v180
    %v282 = vunpack.c.l.b16 %v181
    %v283 = vunpack.c.h.b16 %v181
    %v284 = vunpack.c.l.b16 %v182
    %v285 = vunpack.c.h.b16 %v182
    %v286 = vunpack.c.l.b16 %v183
    %v287 = vunpack.c.h.b16 %v183
    %v288 = vunpack.c.l.b16 %v184
    %v289 = vunpack.c.h.b16 %v184
    %v290 = vunpack.c.l.b16 %v185
    %v291 = vunpack.c.h.b16 %v185
    %v292 = vunpack.c.l.b16 %v186
    %v293 = vunpack.c.h.b16 %v186
    %v294 = vunpack.c.l.b16 %v187
    %v295 = vunpack.c.h.b16 %v187
    %v296 = vpack.c.b16 %v234, %v232
    %v297 = vpack.c.b16 %v235, %v233
    %v298 = vpack.c.b16 %v238, %v236
    %v299 = vpack.c.b16 %v239, %v237
    %v300 = vpack.c.b16 %v242, %v240
    %v301 = vpack.c.b16 %v243, %v241
    %v302 = vpack.c.b16 %v246, %v244
    %v303 = vpack.c.b16 %v247, %v245
    %v304 = vpack.c.b16 %v250, %v248
    %v305 = vpack.c.b16 %v251, %v249
    %v306 = vpack.c.b16 %v254, %v252
    %v307 = vpack.c.b16 %v255, %v253
    %v308 = vpack.c.b16 %v258, %v256
    %v309 = vpack.c.b16 %v259, %v257
    %v310 = vpack.c.b16 %v262, %v260
    %v311 = vpack.c.b16 %v263, %v261
    %v312 = vpack.c.b16 %v266, %v264
    %v313 = vpack.c.b16 %v267, %v265
    %v314 = vpack.c.b16 %v270, %v268
    %v315 = vpack.c.b16 %v271, %v269
    %v316 = vpack.c.b16 %v274, %v272
    %v317 = vpack.c.b16 %v275, %v273
    %v318 = vpack.c.b16 %v278, %v276
    %v319 = vpack.c.b16 %v279, %v277
    %v320 = vpack.c.b16 %v282, %v280
    %v321 = vpack.c.b16 %v283, %v281
    %v322 = vpack.c.b16 %v286, %v284
    %v323 = vpack.c.b16 %v287, %v285
    %v324 = vpack.c.b16 %v290, %v288
    %v325 = vpack.c.b16 %v291, %v289
    %v326 = vpack.c.b16 %v294, %v292
    %v327 = vpack.c.b16 %v295, %v293
    %360 = vmatprep.subr.bf16.mxu0 %v297
    %361 = vmatpush1.bf16.msra.mxu0 %v296
    %362 = vmatprep.subr.bf16.mxu0 %v299
    %363 = vmatpush1.bf16.msra.mxu0 %v298
    %364 = vmatprep.subr.bf16.mxu0 %v301
    %365 = vmatpush1.bf16.msra.mxu0 %v300
    %366 = vmatprep.subr.bf16.mxu0 %v303
    %367 = vmatpush1.bf16.msra.mxu0 %v302
    %368 = vmatprep.subr.bf16.mxu0 %v305
    %369 = vmatpush1.bf16.msra.mxu0 %v304
    %370 = vmatprep.subr.bf16.mxu0 %v307
    %371 = vmatpush1.bf16.msra.mxu0 %v306
    %372 = vmatprep.subr.bf16.mxu0 %v309
    %373 = vmatpush1.bf16.msra.mxu0 %v308
    %374 = vmatprep.subr.bf16.mxu0 %v311
    %375 = vmatpush1.bf16.msra.mxu0 %v310
    %376 = vmatprep.subr.bf16.mxu0 %v313
    %377 = vmatpush1.bf16.msra.mxu0 %v312
    %378 = vmatprep.subr.bf16.mxu0 %v315
    %379 = vmatpush1.bf16.msra.mxu0 %v314
    %380 = vmatprep.subr.bf16.mxu0 %v317
    %381 = vmatpush1.bf16.msra.mxu0 %v316
    %382 = vmatprep.subr.bf16.mxu0 %v319
    %383 = vmatpush1.bf16.msra.mxu0 %v318
    %384 = vmatprep.subr.bf16.mxu0 %v321
    %385 = vmatpush1.bf16.msra.mxu0 %v320
    %386 = vmatprep.subr.bf16.mxu0 %v323
    %387 = vmatpush1.bf16.msra.mxu0 %v322
    %388 = vmatprep.subr.bf16.mxu0 %v325
    %389 = vmatpush1.bf16.msra.mxu0 %v324
    %390 = vmatprep.subr.bf16.mxu0 %v327
    %391 = vmatpush1.bf16.msra.mxu0 %v326
    %392 = vmatprep.mubr.bf16.mxu0 %v155
    %393 = vmatmul.mubr.bf16.gmra.mrb[0].mxu0 %v154
    %v394 = vpop.f32.mrb[0].mxu0
    %v395 = vadd.f32 %v193, %v394
    %v396 = vpop.f32.mrb[0].mxu0
    %v397 = vadd.f32 %v197, %v396
    %v398 = vpop.f32.mrb[0].mxu0
    %v399 = vpop.f32.mrb[0].mxu0
    %400 = vdwg.mxu0
    %v401 = vmax.f32 %v395, 0.0
    %v402 = vmax.f32 %v397, 0.0
    %v403 = vld [vmem:[%s5] sm:$0x3]
    %v405 = vlaneseq
    %v406 = vshrl.u32 %v405, 7
    %v407 = vsub.s32 0, %v406
    %v408 = vrot.slane %v403, %v407
    %v409 = vlaneseq
    %v410 = vshrl.u32 %v409, 7
    %v411 = vsub.s32 1, %v410
    %v412 = vrot.slane %v403, %v411
    %v415 = vmul.f32 %v401, %v408
    %v416 = vmul.f32 %v402, %v412
    %v417 = vadd.f32 %v415, %v416
    %418 = vadd.xlane.f32.xlu0 %v417
    %v419 = vpop.xlane.xlu0 %418
    %s420 = sld [smem:[#allocation2]]
    %v421 = vstv %s420
    %v422 = vadd.f32 %v419, %v421
    %423 = vxpose.xlu0.b32.start [1/16] %v422, 128
    %424 = vxpose.xlu0.b32.cont [2/16] 0.0, 128
    %425 = vxpose.xlu0.b32.cont [3/16] 0.0, 128
    %426 = vxpose.xlu0.b32.cont [4/16] 0.0, 128
    %427 = vxpose.xlu0.b32.cont [5/16] 0.0, 128
    %428 = vxpose.xlu0.b32.cont [6/16] 0.0, 128
    %429 = vxpose.xlu0.b32.cont [7/16] 0.0, 128
    %430 = vxpose.xlu0.b32.cont [8/16] 0.0, 128
    %431 = vxpose.xlu0.b32.cont [9/16] 0.0, 128
    %432 = vxpose.xlu0.b32.cont [10/16] 0.0, 128
    %433 = vxpose.xlu0.b32.cont [11/16] 0.0, 128
    %434 = vxpose.xlu0.b32.cont [12/16] 0.0, 128
    %435 = vxpose.xlu0.b32.cont [13/16] 0.0, 128
    %436 = vxpose.xlu0.b32.cont [14/16] 0.0, 128
    %437 = vxpose.xlu0.b32.cont [15/16] 0.0, 128
    %438 = vxpose.xlu0.b32.end [16/16] 0.0, 128
    %v439 = vpop.trf.xlu0
    %v440 = vpop.trf.xlu0
    %v441 = vpop.trf.xlu0
    %v442 = vpop.trf.xlu0
    %v443 = vpop.trf.xlu0
    %v444 = vpop.trf.xlu0
    %v445 = vpop.trf.xlu0
    %v446 = vpop.trf.xlu0
    %v447 = vpop.trf.xlu0
    %v448 = vpop.trf.xlu0
    %v449 = vpop.trf.xlu0
    %v450 = vpop.trf.xlu0
    %v451 = vpop.trf.xlu0
    %v452 = vpop.trf.xlu0
    %v453 = vpop.trf.xlu0
    %v454 = vpop.trf.xlu0
    %vm455 = vcmask 57344
    %456 = vst.msk [vmem:[#allocation9] sm:$0x1] %vm455, %v439
    // Predicated region
    $region42: #{tpu_custom_call.1} parent=1 // pred_check
      _
    $region43: #{tpu_custom_call.1} parent=1 // pred_check_branch
      %458 = sbr.rel (0) target = $region45
    $region44: #{tpu_custom_call.1} parent=1 // pred_region
      %s460 = ssub.s32 16, 16
      %461 = vsyncadd [#allocation5], %s460
      %s463 = sshll.u32 [#allocation9], 4
      %s464 = int_to_ptr.vmem [resolvable:$true] %s463
      %466 = dma.vmem_to_hbm [thread:$0]  %s464, 16, %s7, [#allocation5]
    $region45: #{tpu_custom_call.1} parent=1 // pred_fallthru
      _
    // Predicated region
    $region46: #{tpu_custom_call.1} parent=1 // pred_check
      _
    $region47: #{tpu_custom_call.1} parent=1 // pred_check_branch
      %468 = sbr.rel (0) target = $region49
    $region48: #{tpu_custom_call.1} parent=1 // pred_region
      %469 = dma.done [#allocation5], 16
    $region49: #{tpu_custom_call.1} parent=1 // pred_fallthru
      _
    %470 = vsyncpa [#allocation4], 1
    %471 = vsyncpa [#allocation7], 1
    %472 = vsyncpa [#allocation5], 1

</llo_original>
